<compile_context>
chip_gen: v7x
topology: tpu7x:2x2x1
jax: 0.10.0
libtpu: 0.0.40
codegen_flags: <defaults>
</compile_context>

<pallas_src>
import functools

import jax
import jax.numpy as jnp
from jax.experimental import pallas as pl
from jax.experimental.pallas import tpu as pltpu

# bf16 MXU feeds (v5e/v6e/v7x MXUs are bf16-native); accumulation stays f32.
_MM_DTYPE = jnp.bfloat16


def _etm_kernel(
    bows_ref,        # (TB, V)  f32   raw bag-of-words counts
    nbows_ref,       # (TB, V)  bf16  normalized bag-of-words (MXU feed)
    eps_ref,         # (TB, K)  f32   reparameterization noise
    w1_ref, b1_ref,  # (V, H) bf16, (1, H) f32
    w2_ref, b2_ref,  # (H, H) bf16, (1, H) f32
    wh_ref, bh_ref,  # (H, 2K) bf16, (1, 2K) f32   fused [wmu | wls], [bmu | bls]
    beta_ref,        # (K, V)  bf16  precomputed topic-word distribution
    out_ref,         # (TB, SLAB) f32 out : [theta | recon | kl | 0-pad] packed slab
    *,
    num_topics,
    slab_width,
):
    K = num_topics
    f32 = jnp.float32
    mm = _MM_DTYPE
    relu = lambda x: jnp.maximum(x, 0.0)

    # ---- encoder MLP (q_theta); dropout (enc_drop) is identity at inference ----
    h1 = relu(jnp.dot(nbows_ref[...], w1_ref[...],
                      preferred_element_type=f32) + b1_ref[...])
    h2 = relu(jnp.dot(h1.astype(mm), w2_ref[...],
                      preferred_element_type=f32) + b2_ref[...])

    # ---- fused variational heads: one (H, 2K) matmul, then lane slices ----
    heads = jnp.dot(h2.astype(mm), wh_ref[...],
                    preferred_element_type=f32) + bh_ref[...]
    mu = heads[:, :K]
    logsig = heads[:, K:]

    # ---- KL divergence (non-training branch): reuse std for exp(logsig) ----
    std = jnp.exp(0.5 * logsig)                 # one EUP exp
    var = std * std                             # exp(logsig) without a 2nd exp
    kl = jnp.sum(-0.5 * (1.0 + logsig - mu * mu - var), axis=-1, keepdims=True)

    # ---- reparameterize + softmax over topics (EUP reciprocal, no VPU divide) ----
    z = mu + eps_ref[...] * std
    z = z - jnp.max(z, axis=-1, keepdims=True)
    ez = jnp.exp(z)
    theta = ez * pl.reciprocal(jnp.sum(ez, axis=-1, keepdims=True), approx=True)

    # ---- decode + per-doc reconstruction loss ----
    res = jnp.dot(theta.astype(mm), beta_ref[...],
                  preferred_element_type=f32)   # (TB, V)
    preds = jnp.log(res + 1e-6)
    recon = -jnp.sum(preds * bows_ref[...], axis=-1, keepdims=True)

    # ---- single lane-dense output slab: [theta | recon | kl | zero pad] ----
    tb = theta.shape[0]
    pad = jnp.zeros((tb, slab_width - K - 2), f32)
    out_ref[...] = jnp.concatenate([theta, recon, kl, pad], axis=-1)


def etm_forward(bows, nbows, eps, params, *, batch_tile=None):
    B, V = bows.shape
    H = params["w1"].shape[1]
    K = params["wmu"].shape[1]

    # ---- batch-independent beta hoisted out of the grid (computed once, XLA) ----
    # get_beta(): logit = alphas(rho.weight) -> (V, K); softmax over vocab; .T
    # Equivalently in (K, V) layout: softmax(alpha_kr @ rho_rv, axis=-1).
    logit_kv = params["alpha_kr"] @ params["rho_rv"]          # (K, V) f32
    beta_kv = jax.nn.softmax(logit_kv, axis=-1).astype(_MM_DTYPE)

    # ---- pre-cast MXU feeds to bf16 in HBM (halves weight DMA bytes) ----
    w1 = params["w1"].astype(_MM_DTYPE)
    w2 = params["w2"].astype(_MM_DTYPE)
    w_heads = jnp.concatenate([params["wmu"], params["wls"]], axis=1).astype(_MM_DTYPE)
    b_heads = jnp.concatenate([params["bmu"], params["bls"]], axis=1)   # f32
    nbows_bf = nbows.astype(_MM_DTYPE)

    # ---- generation-aware batch tiling ----
    # Small batches: single grid step (no per-step overhead on 1-TC v5e/v6e, no
    # weight-DMA doubling under v7x megacore).  Large batches: 128/256-row tiles
    # (MXU M-dim filled, bf16 sublane-packed) sharded across cores.
    if batch_tile is not None:
        TB = batch_tile
    elif B <= 256:
        TB = B
    elif B % 256 == 0:
        TB = 256
    elif B % 128 == 0:
        TB = 128
    else:
        TB = B
    assert B % TB == 0, (B, TB)
    grid = (B // TB,)
    semantics = ("parallel",) if grid[0] > 1 else ("arbitrary",)

    # Packed output slab: [theta (K) | recon (1) | kl (1) | zero pad] -> lane-dense.
    SLAB = max(128, pl.cdiv(K + 2, 128) * 128)

    def batch_spec(last):
        return pl.BlockSpec((TB, last), lambda i: (i, 0))

    def full_spec(shape):
        return pl.BlockSpec(shape, lambda i: (0,) * len(shape))

    inputs = [
        bows, nbows_bf, eps,
        w1, params["b1"], w2, params["b2"],
        w_heads, b_heads,
        beta_kv,
    ]
    in_specs = [
        batch_spec(V), batch_spec(V), batch_spec(K),
        full_spec((V, H)), full_spec((1, H)),
        full_spec((H, H)), full_spec((1, H)),
        full_spec((H, 2 * K)), full_spec((1, 2 * K)),
        full_spec((K, V)),
    ]

    slab = pl.pallas_call(
        functools.partial(_etm_kernel, num_topics=K, slab_width=SLAB),
        grid=grid,
        in_specs=in_specs,
        out_specs=batch_spec(SLAB),
        out_shape=jax.ShapeDtypeStruct((B, SLAB), jnp.float32),
        compiler_params=pltpu.CompilerParams(dimension_semantics=semantics),
    )(*inputs)

    theta = slab[:, :K]
    recon_per = slab[:, K]
    kl_per = slab[:, K + 1]

    # aggregate=True path: mean over documents (finished outside the kernel).
    return jnp.mean(recon_per), jnp.mean(kl_per), theta


def etm_reference(bows, nbows, eps, params):
    """Pure-JAX f32 reference mirroring the PyTorch forward (eval mode)."""
    act = lambda x: jnp.maximum(x, 0.0)
    h1 = act(nbows @ params["w1"] + params["b1"])
    h2 = act(h1 @ params["w2"] + params["b2"])
    mu = h2 @ params["wmu"] + params["bmu"]
    logsig = h2 @ params["wls"] + params["bls"]
    kld = jnp.mean(jnp.sum(-0.5 * (1 + logsig - mu ** 2 - jnp.exp(logsig)), -1))
    z = mu + eps * jnp.exp(0.5 * logsig)
    theta = jax.nn.softmax(z, axis=-1)
    # get_beta(): logit = alphas(rho.weight) -> (V, K); softmax over vocab; transpose.
    logit_vk = params["rho_rv"].T @ params["alpha_kr"].T          # (V, K)
    beta = jax.nn.softmax(logit_vk, axis=0).T                     # (K, V)
    preds = jnp.log(theta @ beta + 1e-6)
    recon = jnp.mean(-jnp.sum(preds * bows, axis=1))
    return recon, kld, theta


def make_params(key, V, H, K, R):
    ks = jax.random.split(key, 8)
    s = 0.05
    return {
        "w1":   s * jax.random.normal(ks[0], (V, H), jnp.float32),
        "b1":   s * jax.random.normal(ks[1], (1, H), jnp.float32),
        "w2":   s * jax.random.normal(ks[2], (H, H), jnp.float32),
        "b2":   s * jax.random.normal(ks[3], (1, H), jnp.float32),
        "wmu":  s * jax.random.normal(ks[4], (H, K), jnp.float32),
        "bmu":  jnp.zeros((1, K), jnp.float32),
        "wls":  s * jax.random.normal(ks[5], (H, K), jnp.float32),
        "bls":  jnp.zeros((1, K), jnp.float32),
        # rho.weight stored pre-transposed to (R, V); alphas.weight is (K, R).
        "rho_rv":   s * jax.random.normal(ks[6], (R, V), jnp.float32),
        "alpha_kr": s * jax.random.normal(ks[7], (K, R), jnp.float32),
    }


if __name__ == "__main__":
    # Small shapes consistent with the module: bsz x vocab bag-of-words input.
    B, V, H, K, R = 16, 256, 64, 16, 32   # batch, vocab, t_hidden, num_topics, rho_size

    key = jax.random.PRNGKey(0)
    k_bow, k_eps, k_par = jax.random.split(key, 3)

    # Deterministic synthetic bag-of-words counts and normalized version.
    bows = jax.random.poisson(k_bow, 1.0, (B, V)).astype(jnp.float32)
    nbows = bows / jnp.maximum(jnp.sum(bows, axis=1, keepdims=True), 1.0)
    eps = jax.random.normal(k_eps, (B, K), jnp.float32)   # reparameterization noise

    params = make_params(k_par, V, H, K, R)

    recon, kld, theta = etm_forward(bows, nbows, eps, params)
    jax.block_until_ready((recon, kld, theta))

    # Sanity check against the pure-f32 JAX reference (kernel uses bf16 MXU feeds
    # and an approx reciprocal, so tolerances allow for that rounding).
    r_ref, k_ref, t_ref = etm_reference(bows, nbows, eps, params)
    assert jnp.allclose(recon, r_ref, rtol=2e-2, atol=2e-3), (recon, r_ref)
    assert jnp.allclose(kld, k_ref, rtol=2e-2, atol=2e-3), (kld, k_ref)
    assert jnp.allclose(theta, t_ref, rtol=2e-2, atol=5e-3)

    print("KERNEL_OK")
</pallas_src>

<mosaic_0001>
module attributes {stable_mosaic.version = 11 : i64} {
  func.func @_etm_kernel(%arg0: i32, %arg1: memref<16x256xf32, #tpu.memory_space<vmem>>, %arg2: memref<16x256xbf16, #tpu.memory_space<vmem>>, %arg3: memref<16x16xf32, #tpu.memory_space<vmem>>, %arg4: memref<256x64xbf16, #tpu.memory_space<vmem>>, %arg5: memref<1x64xf32, #tpu.memory_space<vmem>>, %arg6: memref<64x64xbf16, #tpu.memory_space<vmem>>, %arg7: memref<1x64xf32, #tpu.memory_space<vmem>>, %arg8: memref<64x32xbf16, #tpu.memory_space<vmem>>, %arg9: memref<1x32xf32, #tpu.memory_space<vmem>>, %arg10: memref<16x256xbf16, #tpu.memory_space<vmem>>, %arg11: memref<16x128xf32, #tpu.memory_space<vmem>>) attributes {dimension_semantics = [#tpu.dimension_semantics<arbitrary>], iteration_bounds = array<i64: 1>, scalar_prefetch = 0 : i64, scratch_operands = 0 : i64, tpu.core_type = #tpu.core_type<tc>, window_params = [{transform_indices = @transform_0, window_bounds = array<i64: 16, 256>}, {transform_indices = @transform_1, window_bounds = array<i64: 16, 256>}, {transform_indices = @transform_2, window_bounds = array<i64: 16, 16>}, {pipeline_mode = #tpu.pipeline_mode<synchronous>, transform_indices = @transform_3, window_bounds = array<i64: 256, 64>}, {pipeline_mode = #tpu.pipeline_mode<synchronous>, transform_indices = @transform_4, window_bounds = array<i64: 1, 64>}, {pipeline_mode = #tpu.pipeline_mode<synchronous>, transform_indices = @transform_5, window_bounds = array<i64: 64, 64>}, {pipeline_mode = #tpu.pipeline_mode<synchronous>, transform_indices = @transform_6, window_bounds = array<i64: 1, 64>}, {pipeline_mode = #tpu.pipeline_mode<synchronous>, transform_indices = @transform_7, window_bounds = array<i64: 64, 32>}, {pipeline_mode = #tpu.pipeline_mode<synchronous>, transform_indices = @transform_8, window_bounds = array<i64: 1, 32>}, {pipeline_mode = #tpu.pipeline_mode<synchronous>, transform_indices = @transform_9, window_bounds = array<i64: 16, 256>}, {transform_indices = @transform_10, window_bounds = array<i64: 16, 128>}]} {
    %c0 = arith.constant 0 : index
    %c0_0 = arith.constant 0 : index
    %0 = vector.load %arg2[%c0, %c0_0] : memref<16x256xbf16, #tpu.memory_space<vmem>>, vector<16x256xbf16>
    %c0_1 = arith.constant 0 : index
    %c0_2 = arith.constant 0 : index
    %1 = vector.load %arg4[%c0_1, %c0_2] : memref<256x64xbf16, #tpu.memory_space<vmem>>, vector<256x64xbf16>
    %cst = arith.constant dense<0.000000e+00> : vector<16x64xf32>
    %2 = tpu.matmul %0, %1, %cst {dimension_numbers = #tpu.dot_dimension_numbers<[1], [0], [0], [1], [0, 0, 1, 1], [], []>} : vector<16x256xbf16>, vector<256x64xbf16>, vector<16x64xf32> -> vector<16x64xf32>
    %c0_3 = arith.constant 0 : index
    %c0_4 = arith.constant 0 : index
    %3 = vector.load %arg5[%c0_3, %c0_4] : memref<1x64xf32, #tpu.memory_space<vmem>>, vector<1x64xf32>
    %4 = vector.broadcast %3 : vector<1x64xf32> to vector<16x64xf32>
    %5 = arith.addf %2, %4 : vector<16x64xf32>
    %cst_5 = arith.constant 0.000000e+00 : f32
    %6 = vector.broadcast %cst_5 : f32 to vector<16x64xf32>
    %7 = arith.maximumf %5, %6 : vector<16x64xf32>
    %8 = arith.truncf %7 : vector<16x64xf32> to vector<16x64xbf16>
    %c0_6 = arith.constant 0 : index
    %c0_7 = arith.constant 0 : index
    %9 = vector.load %arg6[%c0_6, %c0_7] : memref<64x64xbf16, #tpu.memory_space<vmem>>, vector<64x64xbf16>
    %cst_8 = arith.constant dense<0.000000e+00> : vector<16x64xf32>
    %10 = tpu.matmul %8, %9, %cst_8 {dimension_numbers = #tpu.dot_dimension_numbers<[1], [0], [0], [1], [0, 0, 1, 1], [], []>} : vector<16x64xbf16>, vector<64x64xbf16>, vector<16x64xf32> -> vector<16x64xf32>
    %c0_9 = arith.constant 0 : index
    %c0_10 = arith.constant 0 : index
    %11 = vector.load %arg7[%c0_9, %c0_10] : memref<1x64xf32, #tpu.memory_space<vmem>>, vector<1x64xf32>
    %12 = vector.broadcast %11 : vector<1x64xf32> to vector<16x64xf32>
    %13 = arith.addf %10, %12 : vector<16x64xf32>
    %cst_11 = arith.constant 0.000000e+00 : f32
    %14 = vector.broadcast %cst_11 : f32 to vector<16x64xf32>
    %15 = arith.maximumf %13, %14 : vector<16x64xf32>
    %16 = arith.truncf %15 : vector<16x64xf32> to vector<16x64xbf16>
    %c0_12 = arith.constant 0 : index
    %c0_13 = arith.constant 0 : index
    %17 = vector.load %arg8[%c0_12, %c0_13] : memref<64x32xbf16, #tpu.memory_space<vmem>>, vector<64x32xbf16>
    %cst_14 = arith.constant dense<0.000000e+00> : vector<16x32xf32>
    %18 = tpu.matmul %16, %17, %cst_14 {dimension_numbers = #tpu.dot_dimension_numbers<[1], [0], [0], [1], [0, 0, 1, 1], [], []>} : vector<16x64xbf16>, vector<64x32xbf16>, vector<16x32xf32> -> vector<16x32xf32>
    %c0_15 = arith.constant 0 : index
    %c0_16 = arith.constant 0 : index
    %19 = vector.load %arg9[%c0_15, %c0_16] : memref<1x32xf32, #tpu.memory_space<vmem>>, vector<1x32xf32>
    %20 = vector.broadcast %19 : vector<1x32xf32> to vector<16x32xf32>
    %21 = arith.addf %18, %20 : vector<16x32xf32>
    %22 = vector.extract_strided_slice %21 {offsets = [0, 0], sizes = [16, 16], strides = [1, 1]} : vector<16x32xf32> to vector<16x16xf32>
    %23 = vector.extract_strided_slice %21 {offsets = [0, 16], sizes = [16, 16], strides = [1, 1]} : vector<16x32xf32> to vector<16x16xf32>
    %cst_17 = arith.constant 5.000000e-01 : f32
    %24 = vector.broadcast %cst_17 : f32 to vector<16x16xf32>
    %25 = arith.mulf %24, %23 : vector<16x16xf32>
    %26 = math.exp %25 : vector<16x16xf32>
    %27 = arith.mulf %26, %26 : vector<16x16xf32>
    %cst_18 = arith.constant 1.000000e+00 : f32
    %28 = vector.broadcast %cst_18 : f32 to vector<16x16xf32>
    %29 = arith.addf %28, %23 : vector<16x16xf32>
    %30 = arith.mulf %22, %22 : vector<16x16xf32>
    %31 = arith.subf %29, %30 : vector<16x16xf32>
    %32 = arith.subf %31, %27 : vector<16x16xf32>
    %cst_19 = arith.constant -5.000000e-01 : f32
    %33 = vector.broadcast %cst_19 : f32 to vector<16x16xf32>
    %34 = arith.mulf %33, %32 : vector<16x16xf32>
    %cst_20 = arith.constant dense<0.000000e+00> : vector<16xf32>
    %35 = vector.multi_reduction <add>, %34, %cst_20 [1] : vector<16x16xf32> to vector<16xf32>
    %36 = vector.shape_cast %35 : vector<16xf32> to vector<16x1xf32>
    %c0_21 = arith.constant 0 : index
    %c0_22 = arith.constant 0 : index
    %37 = vector.load %arg3[%c0_21, %c0_22] : memref<16x16xf32, #tpu.memory_space<vmem>>, vector<16x16xf32>
    %38 = arith.mulf %37, %26 : vector<16x16xf32>
    %39 = arith.addf %22, %38 : vector<16x16xf32>
    %cst_23 = arith.constant dense<0xFF800000> : vector<16xf32>
    %40 = vector.multi_reduction <maximumf>, %39, %cst_23 [1] : vector<16x16xf32> to vector<16xf32>
    %41 = vector.shape_cast %40 : vector<16xf32> to vector<16x1xf32>
    %42 = vector.broadcast %41 : vector<16x1xf32> to vector<16x16xf32>
    %43 = arith.subf %39, %42 : vector<16x16xf32>
    %44 = math.exp %43 : vector<16x16xf32>
    %cst_24 = arith.constant dense<0.000000e+00> : vector<16xf32>
    %45 = vector.multi_reduction <add>, %44, %cst_24 [1] : vector<16x16xf32> to vector<16xf32>
    %46 = vector.shape_cast %45 : vector<16xf32> to vector<16x1xf32>
    %47 = tpu.reciprocal %46 {approx = true} : vector<16x1xf32> -> vector<16x1xf32>
    %48 = vector.broadcast %47 : vector<16x1xf32> to vector<16x16xf32>
    %49 = arith.mulf %44, %48 : vector<16x16xf32>
    %50 = arith.truncf %49 : vector<16x16xf32> to vector<16x16xbf16>
    %c0_25 = arith.constant 0 : index
    %c0_26 = arith.constant 0 : index
    %51 = vector.load %arg10[%c0_25, %c0_26] : memref<16x256xbf16, #tpu.memory_space<vmem>>, vector<16x256xbf16>
    %cst_27 = arith.constant dense<0.000000e+00> : vector<16x256xf32>
    %52 = tpu.matmul %50, %51, %cst_27 {dimension_numbers = #tpu.dot_dimension_numbers<[1], [0], [0], [1], [0, 0, 1, 1], [], []>} : vector<16x16xbf16>, vector<16x256xbf16>, vector<16x256xf32> -> vector<16x256xf32>
    %cst_28 = arith.constant 9.99999997E-7 : f32
    %53 = vector.broadcast %cst_28 : f32 to vector<16x256xf32>
    %54 = arith.addf %52, %53 : vector<16x256xf32>
    %55 = math.log %54 : vector<16x256xf32>
    %c0_29 = arith.constant 0 : index
    %c0_30 = arith.constant 0 : index
    %56 = vector.load %arg1[%c0_29, %c0_30] : memref<16x256xf32, #tpu.memory_space<vmem>>, vector<16x256xf32>
    %57 = arith.mulf %55, %56 : vector<16x256xf32>
    %cst_31 = arith.constant dense<0.000000e+00> : vector<16xf32>
    %58 = vector.multi_reduction <add>, %57, %cst_31 [1] : vector<16x256xf32> to vector<16xf32>
    %59 = vector.shape_cast %58 : vector<16xf32> to vector<16x1xf32>
    %cst_32 = arith.constant 0.000000e+00 : f32
    %60 = vector.broadcast %cst_32 : f32 to vector<16x1xf32>
    %61 = arith.subf %60, %59 : vector<16x1xf32>
    %cst_33 = arith.constant 0.000000e+00 : f32
    %62 = vector.broadcast %cst_33 : f32 to vector<16x110xf32>
    %63 = tpu.concatenate %49, %61, %36, %62 in 1 : vector<16x16xf32>, vector<16x1xf32>, vector<16x1xf32>, vector<16x110xf32> -> vector<16x128xf32>
    %c0_34 = arith.constant 0 : index
    %c0_35 = arith.constant 0 : index
    %64 = vector.load %arg11[%c0_34, %c0_35] : memref<16x128xf32, #tpu.memory_space<vmem>>, vector<16x128xf32>
    tpu.vector_store %arg11[%c0_34, %c0_35], %63 {strides = array<i32>} : memref<16x128xf32, #tpu.memory_space<vmem>>, vector<16x128xf32>,
    return
  }
  func.func @transform_0(%arg0: i32) -> (i32, i32) {
    %c0_i32 = arith.constant 0 : i32
    %c0_i32_0 = arith.constant 0 : i32
    return %arg0, %c0_i32 : i32, i32
  }
  func.func @transform_1(%arg0: i32) -> (i32, i32) {
    %c0_i32 = arith.constant 0 : i32
    %c0_i32_0 = arith.constant 0 : i32
    return %arg0, %c0_i32 : i32, i32
  }
  func.func @transform_2(%arg0: i32) -> (i32, i32) {
    %c0_i32 = arith.constant 0 : i32
    %c0_i32_0 = arith.constant 0 : i32
    return %arg0, %c0_i32 : i32, i32
  }
  func.func @transform_3(%arg0: i32) -> (i32, i32) {
    %c0_i32 = arith.constant 0 : i32
    %c0_i32_0 = arith.constant 0 : i32
    %c0_i32_1 = arith.constant 0 : i32
    return %c0_i32, %c0_i32_0 : i32, i32
  }
  func.func @transform_4(%arg0: i32) -> (i32, i32) {
    %c0_i32 = arith.constant 0 : i32
    %c0_i32_0 = arith.constant 0 : i32
    %c0_i32_1 = arith.constant 0 : i32
    return %c0_i32, %c0_i32_0 : i32, i32
  }
  func.func @transform_5(%arg0: i32) -> (i32, i32) {
    %c0_i32 = arith.constant 0 : i32
    %c0_i32_0 = arith.constant 0 : i32
    %c0_i32_1 = arith.constant 0 : i32
    return %c0_i32, %c0_i32_0 : i32, i32
  }
  func.func @transform_6(%arg0: i32) -> (i32, i32) {
    %c0_i32 = arith.constant 0 : i32
    %c0_i32_0 = arith.constant 0 : i32
    %c0_i32_1 = arith.constant 0 : i32
    return %c0_i32, %c0_i32_0 : i32, i32
  }
  func.func @transform_7(%arg0: i32) -> (i32, i32) {
    %c0_i32 = arith.constant 0 : i32
    %c0_i32_0 = arith.constant 0 : i32
    %c0_i32_1 = arith.constant 0 : i32
    return %c0_i32, %c0_i32_0 : i32, i32
  }
  func.func @transform_8(%arg0: i32) -> (i32, i32) {
    %c0_i32 = arith.constant 0 : i32
    %c0_i32_0 = arith.constant 0 : i32
    %c0_i32_1 = arith.constant 0 : i32
    return %c0_i32, %c0_i32_0 : i32, i32
  }
  func.func @transform_9(%arg0: i32) -> (i32, i32) {
    %c0_i32 = arith.constant 0 : i32
    %c0_i32_0 = arith.constant 0 : i32
    %c0_i32_1 = arith.constant 0 : i32
    return %c0_i32, %c0_i32_0 : i32, i32
  }
  func.func @transform_10(%arg0: i32) -> (i32, i32) {
    %c0_i32 = arith.constant 0 : i32
    %c0_i32_0 = arith.constant 0 : i32
    return %arg0, %c0_i32 : i32, i32
  }
}

</mosaic_0001>

<llo_original>
// kernel: tpu_custom_call.1
$region0: #{tpu_custom_call.1}
  #allocation0 [shape = 'u32[]', space=smem, size = 0x4, offset = 0x4, fixed_abs, tag = 'smem constant byte address 0x4 - core index']
  #allocation1 [shape = 'u32[144,128]{1,0:T(1,128)}', space=vmem, size = 0x12000, scoped, tag = 'internal scratch']
  %s0 = inlined_call_operand.vmem [shape: f32[16,256], index: 0, kind: input, shape index: {}]
  %s1 = inlined_call_operand.vmem [shape: bf16[16,256], index: 1, kind: input, shape index: {}]
  %s2 = inlined_call_operand.vmem [shape: f32[16,16], index: 2, kind: input, shape index: {}]
  %s3 = inlined_call_operand.vmem [shape: bf16[256,64], index: 3, kind: input, shape index: {}]
  %s4 = inlined_call_operand.vmem [shape: f32[1,64], index: 4, kind: input, shape index: {}]
  %s5 = inlined_call_operand.vmem [shape: bf16[64,64], index: 5, kind: input, shape index: {}]
  %s6 = inlined_call_operand.vmem [shape: f32[1,64], index: 6, kind: input, shape index: {}]
  %s7 = inlined_call_operand.vmem [shape: bf16[64,32], index: 7, kind: input, shape index: {}]
  %s8 = inlined_call_operand.vmem [shape: f32[1,32], index: 8, kind: input, shape index: {}]
  %s9 = inlined_call_operand.vmem [shape: bf16[16,256], index: 9, kind: input, shape index: {}]
  %s10 = inlined_call_operand.hbm [shape: f32[16,128], index: 10, kind: output, shape index: {}]
  %s11 = sld [smem:[#allocation0]]
  $region50: #{tpu_custom_call.1} parent=0
    _
  %s13 = ssub.s32 1, %s11
  %s14 = scalar_select 0, %s13, %s11
  $region1: #{tpu_custom_call.1} parent=0
    #allocation2 [shape = 'u8[8192]{0}', space=vmem, size = 0x2000, scoped, tag = 'output window, operand 0, single buffered']
    #allocation3 [shape = 's32[1]{0}', space=sflag, size = 0x4, scoped, tag = 'scoped memory for tpu_custom_call.1']
    %15 = vsyncpa [#allocation3], 0
    // Predicated region
    $region2: #{tpu_custom_call.1} parent=1 // pred_check
      _
    $region3: #{tpu_custom_call.1} parent=1 // pred_check_branch
      %17 = sbr.rel (0) target = $region5
    $region4: #{tpu_custom_call.1} parent=1 // pred_region
      _
    $region5: #{tpu_custom_call.1} parent=1 // pred_fallthru
      _
    // Predicated region
    $region6: #{tpu_custom_call.1} parent=1 // pred_check
      _
    $region7: #{tpu_custom_call.1} parent=1 // pred_check_branch
      %19 = sbr.rel (0) target = $region9
    $region8: #{tpu_custom_call.1} parent=1 // pred_region
      _
    $region9: #{tpu_custom_call.1} parent=1 // pred_fallthru
      _
    // Predicated region
    $region10: #{tpu_custom_call.1} parent=1 // pred_check
      _
    $region11: #{tpu_custom_call.1} parent=1 // pred_check_branch
      %21 = sbr.rel (0) target = $region13
    $region12: #{tpu_custom_call.1} parent=1 // pred_region
      _
    $region13: #{tpu_custom_call.1} parent=1 // pred_fallthru
      _
    // Predicated region
    $region14: #{tpu_custom_call.1} parent=1 // pred_check
      _
    $region15: #{tpu_custom_call.1} parent=1 // pred_check_branch
      %23 = sbr.rel (0) target = $region17
    $region16: #{tpu_custom_call.1} parent=1 // pred_region
      _
    $region17: #{tpu_custom_call.1} parent=1 // pred_fallthru
      _
    // Predicated region
    $region18: #{tpu_custom_call.1} parent=1 // pred_check
      _
    $region19: #{tpu_custom_call.1} parent=1 // pred_check_branch
      %25 = sbr.rel (0) target = $region21
    $region20: #{tpu_custom_call.1} parent=1 // pred_region
      _
    $region21: #{tpu_custom_call.1} parent=1 // pred_fallthru
      _
    // Predicated region
    $region22: #{tpu_custom_call.1} parent=1 // pred_check
      _
    $region23: #{tpu_custom_call.1} parent=1 // pred_check_branch
      %27 = sbr.rel (0) target = $region25
    $region24: #{tpu_custom_call.1} parent=1 // pred_region
      _
    $region25: #{tpu_custom_call.1} parent=1 // pred_fallthru
      _
    // Predicated region
    $region26: #{tpu_custom_call.1} parent=1 // pred_check
      _
    $region27: #{tpu_custom_call.1} parent=1 // pred_check_branch
      %29 = sbr.rel (0) target = $region29
    $region28: #{tpu_custom_call.1} parent=1 // pred_region
      _
    $region29: #{tpu_custom_call.1} parent=1 // pred_fallthru
      _
    // Predicated region
    $region30: #{tpu_custom_call.1} parent=1 // pred_check
      _
    $region31: #{tpu_custom_call.1} parent=1 // pred_check_branch
      %31 = sbr.rel (0) target = $region33
    $region32: #{tpu_custom_call.1} parent=1 // pred_region
      _
    $region33: #{tpu_custom_call.1} parent=1 // pred_fallthru
      _
    // Predicated region
    $region34: #{tpu_custom_call.1} parent=1 // pred_check
      _
    $region35: #{tpu_custom_call.1} parent=1 // pred_check_branch
      %33 = sbr.rel (0) target = $region37
    $region36: #{tpu_custom_call.1} parent=1 // pred_region
      _
    $region37: #{tpu_custom_call.1} parent=1 // pred_fallthru
      _
    // Predicated region
    $region38: #{tpu_custom_call.1} parent=1 // pred_check
      _
    $region39: #{tpu_custom_call.1} parent=1 // pred_check_branch
      %35 = sbr.rel (0) target = $region41
    $region40: #{tpu_custom_call.1} parent=1 // pred_region
      _
    $region41: #{tpu_custom_call.1} parent=1 // pred_fallthru
      _
    %v37 = vld [vmem:[%s1] sm:$0xff]
    %v38 = vld [vmem:[%s1 + $0x8] sm:$0xff]
    %v39 = vld [vmem:[%s3] sm:$0xf]
    %v40 = vld [vmem:[%s3 + $0x4] sm:$0xf]
    %v41 = vld [vmem:[%s3 + $0x8] sm:$0xf]
    %v42 = vld [vmem:[%s3 + $0xc] sm:$0xf]
    %v43 = vld [vmem:[%s3 + $0x10] sm:$0xf]
    %v44 = vld [vmem:[%s3 + $0x14] sm:$0xf]
    %v45 = vld [vmem:[%s3 + $0x18] sm:$0xf]
    %v46 = vld [vmem:[%s3 + $0x1c] sm:$0xf]
    %v47 = vld [vmem:[%s3 + $0x20] sm:$0xf]
    %v48 = vld [vmem:[%s3 + $0x24] sm:$0xf]
    %v49 = vld [vmem:[%s3 + $0x28] sm:$0xf]
    %v50 = vld [vmem:[%s3 + $0x2c] sm:$0xf]
    %v51 = vld [vmem:[%s3 + $0x30] sm:$0xf]
    %v52 = vld [vmem:[%s3 + $0x34] sm:$0xf]
    %v53 = vld [vmem:[%s3 + $0x38] sm:$0xf]
    %v54 = vld [vmem:[%s3 + $0x3c] sm:$0xf]
    %v55 = vld [vmem:[%s3 + $0x40] sm:$0xf]
    %v56 = vld [vmem:[%s3 + $0x44] sm:$0xf]
    %v57 = vld [vmem:[%s3 + $0x48] sm:$0xf]
    %v58 = vld [vmem:[%s3 + $0x4c] sm:$0xf]
    %v59 = vld [vmem:[%s3 + $0x50] sm:$0xf]
    %v60 = vld [vmem:[%s3 + $0x54] sm:$0xf]
    %v61 = vld [vmem:[%s3 + $0x58] sm:$0xf]
    %v62 = vld [vmem:[%s3 + $0x5c] sm:$0xf]
    %v63 = vld [vmem:[%s3 + $0x60] sm:$0xf]
    %v64 = vld [vmem:[%s3 + $0x64] sm:$0xf]
    %v65 = vld [vmem:[%s3 + $0x68] sm:$0xf]
    %v66 = vld [vmem:[%s3 + $0x6c] sm:$0xf]
    %v67 = vld [vmem:[%s3 + $0x70] sm:$0xf]
    %v68 = vld [vmem:[%s3 + $0x74] sm:$0xf]
    %v69 = vld [vmem:[%s3 + $0x78] sm:$0xf]
    %v70 = vld [vmem:[%s3 + $0x7c] sm:$0xf]
    %v71 = vld [vmem:[%s4] sm:$0x1]
    %v73 = vlaneseq
    %v74 = vshrl.u32 %v73, 7
    %v75 = vsub.s32 0, %v74
    %v76 = vrot.slane %v71, %v75
    %v80 = vunpack.c.l.b16 %v37
    %v81 = vunpack.c.h.b16 %v37
    %v82 = vunpack.c.l.b16 %v38
    %v83 = vunpack.c.h.b16 %v38
    %v84 = vpack.c.b16 %v82, %v80
    %v85 = vpack.c.b16 %v83, %v81
    %v120 = vunpack.c.l.b16 %v39
    %v121 = vunpack.c.l.b16 %v40
    %v122 = vunpack.c.l.b16 %v41
    %v123 = vunpack.c.l.b16 %v42
    %v124 = vunpack.c.l.b16 %v43
    %v125 = vunpack.c.l.b16 %v44
    %v126 = vunpack.c.l.b16 %v45
    %v127 = vunpack.c.l.b16 %v46
    %v128 = vunpack.c.l.b16 %v47
    %v129 = vunpack.c.l.b16 %v48
    %v130 = vunpack.c.l.b16 %v49
    %v131 = vunpack.c.l.b16 %v50
    %v132 = vunpack.c.l.b16 %v51
    %v133 = vunpack.c.l.b16 %v52
    %v134 = vunpack.c.l.b16 %v53
    %v135 = vunpack.c.l.b16 %v54
    %v136 = vunpack.c.l.b16 %v55
    %v137 = vunpack.c.l.b16 %v56
    %v138 = vunpack.c.l.b16 %v57
    %v139 = vunpack.c.l.b16 %v58
    %v140 = vunpack.c.l.b16 %v59
    %v141 = vunpack.c.l.b16 %v60
    %v142 = vunpack.c.l.b16 %v61
    %v143 = vunpack.c.l.b16 %v62
    %v144 = vunpack.c.l.b16 %v63
    %v145 = vunpack.c.l.b16 %v64
    %v146 = vunpack.c.l.b16 %v65
    %v147 = vunpack.c.l.b16 %v66
    %v148 = vunpack.c.l.b16 %v67
    %v149 = vunpack.c.l.b16 %v68
    %v150 = vunpack.c.l.b16 %v69
    %v151 = vunpack.c.l.b16 %v70
    %v152 = vpack.c.b16 %v121, %v120
    %v153 = vpack.c.b16 %v123, %v122
    %v154 = vpack.c.b16 %v125, %v124
    %v155 = vpack.c.b16 %v127, %v126
    %v156 = vpack.c.b16 %v129, %v128
    %v157 = vpack.c.b16 %v131, %v130
    %v158 = vpack.c.b16 %v133, %v132
    %v159 = vpack.c.b16 %v135, %v134
    %v160 = vpack.c.b16 %v137, %v136
    %v161 = vpack.c.b16 %v139, %v138
    %v162 = vpack.c.b16 %v141, %v140
    %v163 = vpack.c.b16 %v143, %v142
    %v164 = vpack.c.b16 %v145, %v144
    %v165 = vpack.c.b16 %v147, %v146
    %v166 = vpack.c.b16 %v149, %v148
    %v167 = vpack.c.b16 %v151, %v150
    %184 = vmatprep.subr.bf16.mxu0 0
    %185 = vmatpush1.bf16.msra.mxu0 %v152
    %186 = vmatprep.subr.bf16.mxu0 0
    %187 = vmatpush1.bf16.msra.mxu0 %v153
    %188 = vmatprep.subr.bf16.mxu0 0
    %189 = vmatpush1.bf16.msra.mxu0 %v154
    %190 = vmatprep.subr.bf16.mxu0 0
    %191 = vmatpush1.bf16.msra.mxu0 %v155
    %192 = vmatprep.subr.bf16.mxu0 0
    %193 = vmatpush1.bf16.msra.mxu0 %v156
    %194 = vmatprep.subr.bf16.mxu0 0
    %195 = vmatpush1.bf16.msra.mxu0 %v157
    %196 = vmatprep.subr.bf16.mxu0 0
    %197 = vmatpush1.bf16.msra.mxu0 %v158
    %198 = vmatprep.subr.bf16.mxu0 0
    %199 = vmatpush1.bf16.msra.mxu0 %v159
    %200 = vmatprep.subr.bf16.mxu0 0
    %201 = vmatpush1.bf16.msra.mxu0 %v160
    %202 = vmatprep.subr.bf16.mxu0 0
    %203 = vmatpush1.bf16.msra.mxu0 %v161
    %204 = vmatprep.subr.bf16.mxu0 0
    %205 = vmatpush1.bf16.msra.mxu0 %v162
    %206 = vmatprep.subr.bf16.mxu0 0
    %207 = vmatpush1.bf16.msra.mxu0 %v163
    %208 = vmatprep.subr.bf16.mxu0 0
    %209 = vmatpush1.bf16.msra.mxu0 %v164
    %210 = vmatprep.subr.bf16.mxu0 0
    %211 = vmatpush1.bf16.msra.mxu0 %v165
    %212 = vmatprep.subr.bf16.mxu0 0
    %213 = vmatpush1.bf16.msra.mxu0 %v166
    %214 = vmatprep.subr.bf16.mxu0 0
    %215 = vmatpush1.bf16.msra.mxu0 %v167
    %216 = vmatprep.mubr.bf16.mxu0 %v85
    %217 = vmatmul.mubr.bf16.gmra.mrb[0].mxu0 %v84
    %v218 = vpop.f32.mrb[0].mxu0
    %v219 = vadd.f32 %v76, %v218
    %v220 = vpop.f32.mrb[0].mxu0
    %v221 = vpop.f32.mrb[0].mxu0
    %v222 = vadd.f32 %v76, %v221
    %v223 = vpop.f32.mrb[0].mxu0
    %224 = vdwg.mxu0
    %v225 = vmax.f32 %v219, 0.0
    %v226 = vmax.f32 %v222, 0.0
    %v227 = vpack.c.bf16 %v226, %v225
    %v228 = vld [vmem:[%s5] sm:$0xf]
    %v229 = vld [vmem:[%s5 + $0x4] sm:$0xf]
    %v230 = vld [vmem:[%s5 + $0x8] sm:$0xf]
    %v231 = vld [vmem:[%s5 + $0xc] sm:$0xf]
    %v232 = vld [vmem:[%s5 + $0x10] sm:$0xf]
    %v233 = vld [vmem:[%s5 + $0x14] sm:$0xf]
    %v234 = vld [vmem:[%s5 + $0x18] sm:$0xf]
    %v235 = vld [vmem:[%s5 + $0x1c] sm:$0xf]
    %v236 = vld [vmem:[%s6] sm:$0x1]
    %v238 = vlaneseq
    %v239 = vshrl.u32 %v238, 7
    %v240 = vsub.s32 0, %v239
    %v241 = vrot.slane %v236, %v240
    %v251 = vunpack.c.l.b16 %v228
    %v252 = vunpack.c.l.b16 %v229
    %v253 = vunpack.c.l.b16 %v230
    %v254 = vunpack.c.l.b16 %v231
    %v255 = vunpack.c.l.b16 %v232
    %v256 = vunpack.c.l.b16 %v233
    %v257 = vunpack.c.l.b16 %v234
    %v258 = vunpack.c.l.b16 %v235
    %v259 = vpack.c.b16 %v252, %v251
    %v260 = vpack.c.b16 %v254, %v253
    %v261 = vpack.c.b16 %v256, %v255
    %v262 = vpack.c.b16 %v258, %v257
    %vm267 = vcmask 523264
    %v269 = vsel %vm267, %v227, 0
    %271 = vmatprep.subr.bf16.mxu0 0
    %272 = vmatpush1.bf16.msra.mxu0 %v259
    %273 = vmatprep.subr.bf16.mxu0 0
    %274 = vmatpush1.bf16.msra.mxu0 %v260
    %275 = vmatprep.subr.bf16.mxu0 0
    %276 = vmatpush1.bf16.msra.mxu0 %v261
    %277 = vmatprep.subr.bf16.mxu0 0
    %278 = vmatpush1.bf16.msra.mxu0 %v262
    %279 = vmatprep.subr.bf16.mxu0 0
    %280 = vmatpush1.bf16.msra.mxu0 0
    %281 = vmatprep.subr.bf16.mxu0 0
    %282 = vmatpush1.bf16.msra.mxu0 0
    %283 = vmatprep.subr.bf16.mxu0 0
    %284 = vmatpush1.bf16.msra.mxu0 0
    %285 = vmatprep.subr.bf16.mxu0 0
    %286 = vmatpush1.bf16.msra.mxu0 0
    %287 = vmatprep.subr.bf16.mxu0 0
    %288 = vmatpush1.bf16.msra.mxu0 0
    %289 = vmatprep.subr.bf16.mxu0 0
    %290 = vmatpush1.bf16.msra.mxu0 0
    %291 = vmatprep.subr.bf16.mxu0 0
    %292 = vmatpush1.bf16.msra.mxu0 0
    %293 = vmatprep.subr.bf16.mxu0 0
    %294 = vmatpush1.bf16.msra.mxu0 0
    %295 = vmatprep.subr.bf16.mxu0 0
    %296 = vmatpush1.bf16.msra.mxu0 0
    %297 = vmatprep.subr.bf16.mxu0 0
    %298 = vmatpush1.bf16.msra.mxu0 0
    %299 = vmatprep.subr.bf16.mxu0 0
    %300 = vmatpush1.bf16.msra.mxu0 0
    %301 = vmatprep.subr.bf16.mxu0 0
    %302 = vmatpush1.bf16.msra.mxu0 0
    %303 = vmatprep.mubr.bf16.mxu0 0
    %304 = vmatmul.mubr.bf16.gmra.mrb[0].mxu0 %v269
    %v305 = vpop.f32.mrb[0].mxu0
    %v306 = vadd.f32 %v241, %v305
    %v307 = vpop.f32.mrb[0].mxu0
    %v308 = vpop.f32.mrb[0].mxu0
    %v309 = vadd.f32 %v241, %v308
    %v310 = vpop.f32.mrb[0].mxu0
    %311 = vdwg.mxu0
    %v312 = vmax.f32 %v306, 0.0
    %v313 = vmax.f32 %v309, 0.0
    %v314 = vpack.c.bf16 %v313, %v312
    %v315 = vld [vmem:[%s7] sm:$0xf]
    %v316 = vld [vmem:[%s7 + $0x4] sm:$0xf]
    %v317 = vld [vmem:[%s7 + $0x8] sm:$0xf]
    %v318 = vld [vmem:[%s7 + $0xc] sm:$0xf]
    %v319 = vld [vmem:[%s7 + $0x10] sm:$0xf]
    %v320 = vld [vmem:[%s7 + $0x14] sm:$0xf]
    %v321 = vld [vmem:[%s7 + $0x18] sm:$0xf]
    %v322 = vld [vmem:[%s7 + $0x1c] sm:$0xf]
    %v323 = vld [vmem:[%s8] sm:$0x1]
    %v325 = vlaneseq
    %v326 = vshrl.u32 %v325, 7
    %v327 = vsub.s32 0, %v326
    %v328 = vrot.slane %v323, %v327
    %v338 = vunpack.c.l.b16 %v315
    %v339 = vunpack.c.l.b16 %v316
    %v340 = vunpack.c.l.b16 %v317
    %v341 = vunpack.c.l.b16 %v318
    %v342 = vunpack.c.l.b16 %v319
    %v343 = vunpack.c.l.b16 %v320
    %v344 = vunpack.c.l.b16 %v321
    %v345 = vunpack.c.l.b16 %v322
    %v346 = vpack.c.b16 %v339, %v338
    %v347 = vpack.c.b16 %v341, %v340
    %v348 = vpack.c.b16 %v343, %v342
    %v349 = vpack.c.b16 %v345, %v344
    %v355 = vsel %vm267, %v314, 0
    %357 = vmatprep.subr.bf16.mxu0 0
    %358 = vmatpush1.bf16.msra.mxu0 %v346
    %359 = vmatprep.subr.bf16.mxu0 0
    %360 = vmatpush1.bf16.msra.mxu0 %v347
    %361 = vmatprep.subr.bf16.mxu0 0
    %362 = vmatpush1.bf16.msra.mxu0 %v348
    %363 = vmatprep.subr.bf16.mxu0 0
    %364 = vmatpush1.bf16.msra.mxu0 %v349
    %365 = vmatprep.subr.bf16.mxu0 0
    %366 = vmatpush1.bf16.msra.mxu0 0
    %367 = vmatprep.subr.bf16.mxu0 0
    %368 = vmatpush1.bf16.msra.mxu0 0
    %369 = vmatprep.subr.bf16.mxu0 0
    %370 = vmatpush1.bf16.msra.mxu0 0
    %371 = vmatprep.subr.bf16.mxu0 0
    %372 = vmatpush1.bf16.msra.mxu0 0
    %373 = vmatprep.subr.bf16.mxu0 0
    %374 = vmatpush1.bf16.msra.mxu0 0
    %375 = vmatprep.subr.bf16.mxu0 0
    %376 = vmatpush1.bf16.msra.mxu0 0
    %377 = vmatprep.subr.bf16.mxu0 0
    %378 = vmatpush1.bf16.msra.mxu0 0
    %379 = vmatprep.subr.bf16.mxu0 0
    %380 = vmatpush1.bf16.msra.mxu0 0
    %381 = vmatprep.subr.bf16.mxu0 0
    %382 = vmatpush1.bf16.msra.mxu0 0
    %383 = vmatprep.subr.bf16.mxu0 0
    %384 = vmatpush1.bf16.msra.mxu0 0
    %385 = vmatprep.subr.bf16.mxu0 0
    %386 = vmatpush1.bf16.msra.mxu0 0
    %387 = vmatprep.subr.bf16.mxu0 0
    %388 = vmatpush1.bf16.msra.mxu0 0
    %389 = vmatprep.mubr.bf16.mxu0 0
    %390 = vmatmul.mubr.bf16.gmra.mrb[0].mxu0 %v355
    %v391 = vpop.f32.mrb[0].mxu0
    %v392 = vadd.f32 %v328, %v391
    %v393 = vpop.f32.mrb[0].mxu0
    %v394 = vpop.f32.mrb[0].mxu0
    %v395 = vadd.f32 %v328, %v394
    %v396 = vpop.f32.mrb[0].mxu0
    %397 = vdwg.mxu0
    %v398 = vmul.f32 %v392, 0.5
    %v399 = vmul.f32 %v395, 0.5
    %v400 = vmul.f32 %v398, 1.442695
    %v401 = vpow.pop %v400
    %v402 = vmul.f32 %v399, 1.442695
    %v403 = vpow.pop %v402
    %v404 = vmul.f32 %v401, %v401
    %v405 = vmul.f32 %v403, %v403
    %v406 = vadd.f32 %v392, 1.0
    %v407 = vadd.f32 %v395, 1.0
    %v408 = vmul.f32 %v392, %v392
    %v409 = vmul.f32 %v395, %v395
    %412 = vrot.lane.b32.xlu0 %v408, 16
    %v413 = vpop.permute.xlu0 %412
    %414 = vrot.lane.b32.xlu0 %v409, 16
    %v415 = vpop.permute.xlu0 %414
    %v418 = vsub.f32 %v406, %v413
    %v419 = vsub.f32 %v407, %v415
    %v420 = vsub.f32 %v418, %v404
    %v421 = vsub.f32 %v419, %v405
    %v422 = vmul.f32 %v420, -0.5
    %v423 = vmul.f32 %v421, -0.5
    %426 = vrot.lane.b32.xlu0 %v422, 112
    %v427 = vpop.permute.xlu0 %426
    %428 = vrot.lane.b32.xlu0 %v423, 112
    %v429 = vpop.permute.xlu0 %428
    %vm432 = vcmask 130048
    %v433 = vsel %vm432, %v427, 0.0
    %434 = vadd.xlane.f32.xlu0 %v433
    %v435 = vpop.xlane.xlu0 %434
    %v436 = vsel %vm432, %v429, 0.0
    %437 = vadd.xlane.f32.xlu0 %v436
    %v438 = vpop.xlane.xlu0 %437
    %v439 = vld [vmem:[%s2] sm:$0xff]
    %v440 = vld [vmem:[%s2 + $0x8] sm:$0xff]
    %443 = vrot.lane.b32.xlu0 %v401, 112
    %v444 = vpop.permute.xlu0 %443
    %445 = vrot.lane.b32.xlu0 %v403, 112
    %v446 = vpop.permute.xlu0 %445
    %v449 = vmul.f32 %v439, %v444
    %v450 = vmul.f32 %v440, %v446
    %v451 = vadd.f32 %v392, %v449
    %v452 = vadd.f32 %v395, %v450
    %v453 = vsel %vm432, %v451, -inf
    %454 = vmax.xlane.f32.xlu0 %v453
    %v455 = vpop.xlane.xlu0 %454
    %v456 = vsel %vm432, %v452, -inf
    %457 = vmax.xlane.f32.xlu0 %v456
    %v458 = vpop.xlane.xlu0 %457
    %v459 = vsub.f32 %v451, %v455
    %v460 = vsub.f32 %v452, %v458
    %v461 = vmul.f32 %v459, 1.442695
    %v462 = vpow.pop %v461
    %v463 = vmul.f32 %v460, 1.442695
    %v464 = vpow.pop %v463
    %v465 = vsel %vm432, %v462, 0.0
    %466 = vadd.xlane.f32.xlu0 %v465
    %v467 = vpop.xlane.xlu0 %466
    %v468 = vsel %vm432, %v464, 0.0
    %469 = vadd.xlane.f32.xlu0 %v468
    %v470 = vpop.xlane.xlu0 %469
    %v471 = vrcp.pop %v467
    %v472 = vrcp.pop %v470
    %v473 = vmul.f32 %v462, %v471
    %v474 = vmul.f32 %v464, %v472
    %v475 = vpack.c.bf16 %v474, %v473
    %v476 = vld [vmem:[%s9] sm:$0xff]
    %v477 = vld [vmem:[%s9 + $0x8] sm:$0xff]
    %v480 = vunpack.c.l.b16 %v476
    %v481 = vunpack.c.h.b16 %v476
    %v482 = vunpack.c.l.b16 %v477
    %v483 = vunpack.c.h.b16 %v477
    %v484 = vpack.c.b16 %v482, %v480
    %v485 = vpack.c.b16 %v483, %v481
    %v489 = vsel %vm432, %v475, 0
    %491 = vmatprep.subr.bf16.mxu0 %v485
    %492 = vmatpush1.bf16.msra.mxu0 %v484
    %493 = vmatprep.subr.bf16.mxu0 0
    %494 = vmatpush1.bf16.msra.mxu0 0
    %495 = vmatprep.subr.bf16.mxu0 0
    %496 = vmatpush1.bf16.msra.mxu0 0
    %497 = vmatprep.subr.bf16.mxu0 0
    %498 = vmatpush1.bf16.msra.mxu0 0
    %499 = vmatprep.subr.bf16.mxu0 0
    %500 = vmatpush1.bf16.msra.mxu0 0
    %501 = vmatprep.subr.bf16.mxu0 0
    %502 = vmatpush1.bf16.msra.mxu0 0
    %503 = vmatprep.subr.bf16.mxu0 0
    %504 = vmatpush1.bf16.msra.mxu0 0
    %505 = vmatprep.subr.bf16.mxu0 0
    %506 = vmatpush1.bf16.msra.mxu0 0
    %507 = vmatprep.subr.bf16.mxu0 0
    %508 = vmatpush1.bf16.msra.mxu0 0
    %509 = vmatprep.subr.bf16.mxu0 0
    %510 = vmatpush1.bf16.msra.mxu0 0
    %511 = vmatprep.subr.bf16.mxu0 0
    %512 = vmatpush1.bf16.msra.mxu0 0
    %513 = vmatprep.subr.bf16.mxu0 0
    %514 = vmatpush1.bf16.msra.mxu0 0
    %515 = vmatprep.subr.bf16.mxu0 0
    %516 = vmatpush1.bf16.msra.mxu0 0
    %517 = vmatprep.subr.bf16.mxu0 0
    %518 = vmatpush1.bf16.msra.mxu0 0
    %519 = vmatprep.subr.bf16.mxu0 0
    %520 = vmatpush1.bf16.msra.mxu0 0
    %521 = vmatprep.subr.bf16.mxu0 0
    %522 = vmatpush1.bf16.msra.mxu0 0
    %523 = vmatprep.mubr.bf16.mxu0 0
    %524 = vmatmul.mubr.bf16.gmra.mrb[0].mxu0 %v489
    %v525 = vpop.f32.mrb[0].mxu0
    %v526 = vadd.f32 1e-06, %v525
    %v527 = vpop.f32.mrb[0].mxu0
    %v528 = vadd.f32 1e-06, %v527
    %v529 = vpop.f32.mrb[0].mxu0
    %v530 = vadd.f32 1e-06, %v529
    %v531 = vpop.f32.mrb[0].mxu0
    %v532 = vadd.f32 1e-06, %v531
    %533 = vdwg.mxu0
    %v534 = vlog2.pop %v526
    %v535 = vmul.f32 %v534, 0.6931472
    %v536 = vlog2.pop %v528
    %v537 = vmul.f32 %v536, 0.6931472
    %v538 = vlog2.pop %v530
    %v539 = vmul.f32 %v538, 0.6931472
    %v540 = vlog2.pop %v532
    %v541 = vmul.f32 %v540, 0.6931472
    %v542 = vld [vmem:[%s0] sm:$0xff]
    %v543 = vld [vmem:[%s0 + $0x8] sm:$0xff]
    %v544 = vld [vmem:[%s0 + $0x10] sm:$0xff]
    %v545 = vld [vmem:[%s0 + $0x18] sm:$0xff]
    %v546 = vmul.f32 %v535, %v542
    %v547 = vmul.f32 %v537, %v543
    %v548 = vmul.f32 %v539, %v544
    %v549 = vmul.f32 %v541, %v545
    %v550 = vadd.f32 %v546, %v547
    %551 = vadd.xlane.f32.xlu0 %v550
    %v552 = vpop.xlane.xlu0 %551
    %v553 = vadd.f32 %v548, %v549
    %554 = vadd.xlane.f32.xlu0 %v553
    %v555 = vpop.xlane.xlu0 %554
    %v556 = vsub.f32 0.0, %v552
    %v557 = vsub.f32 0.0, %v555
    %v558 = vsel %vm432, %v473, %v556
    %v559 = vsel %vm432, %v474, %v557
    %vm560 = vcmask 138240
    %v561 = vsel %vm560, %v558, %v435
    %v562 = vsel %vm560, %v559, %v438
    %vm563 = vcmask 146432
    %v564 = vsel %vm563, %v561, 0.0
    %v565 = vsel %vm563, %v562, 0.0
    %566 = vst [vmem:[#allocation2] sm:$0xff] %v564
    %567 = vst [vmem:[#allocation2 + $0x8] sm:$0xff] %v565
    // Predicated region
    $region42: #{tpu_custom_call.1} parent=1 // pred_check
      _
    $region43: #{tpu_custom_call.1} parent=1 // pred_check_branch
      %569 = sbr.rel (0) target = $region45
    $region44: #{tpu_custom_call.1} parent=1 // pred_region
      %s571 = ssub.s32 256, 256
      %572 = vsyncadd [#allocation3], %s571
      %s573 = sshll.u32 [#allocation2], 4
      %s574 = int_to_ptr.vmem [resolvable:$true] %s573
      %579 = dma.vmem_to_hbm [thread:$0]  %s574, 256, %s10, [#allocation3], 128, 128, 8
    $region45: #{tpu_custom_call.1} parent=1 // pred_fallthru
      _
    // Predicated region
    $region46: #{tpu_custom_call.1} parent=1 // pred_check
      _
    $region47: #{tpu_custom_call.1} parent=1 // pred_check_branch
      %581 = sbr.rel (0) target = $region49
    $region48: #{tpu_custom_call.1} parent=1 // pred_region
      %582 = dma.done [#allocation3], 256
    $region49: #{tpu_custom_call.1} parent=1 // pred_fallthru
      _
    %583 = vsyncpa [#allocation3], 1

</llo_original>
